<compile_context>
chip_gen: v5e
topology: v5e:2x2
jax: 0.10.0
libtpu: 0.0.40
codegen_flags: <defaults>
</compile_context>

<pallas_src>
import functools

import jax
import jax.numpy as jnp
from jax.experimental import pallas as pl
from jax.experimental.pallas import tpu as pltpu


_LANE = 128


def _cdiv(a, b):
    return -(-a // b)


def _sublane_tile(dtype):
    return {4: 8, 2: 16, 1: 32}[jnp.dtype(dtype).itemsize]


def _block_vmem_bytes(block_shape, dtype):
    """Padded VMEM footprint of ONE pipeline buffer of this block (incl. tile padding)."""
    itemsize = jnp.dtype(dtype).itemsize
    st = _sublane_tile(dtype)
    *lead, s, l = block_shape
    n = 1
    for d in lead:
        n *= d
    return n * _cdiv(s, st) * st * _cdiv(l, _LANE) * _LANE * itemsize


def _vmem_limit(blocks):
    """Scoped-VMEM request for a call with the given (block_shape, dtype) operands."""
    need = 2 * sum(_block_vmem_bytes(s, d) for s, d in blocks)   # double-buffered
    return int(min(max(need + (4 << 20), 16 << 20), 48 << 20))


def _choose_rows(r3, p, w, stream_dtype,
                 target_img_block_bytes=4 << 20, vmem_budget_bytes=40 << 20):
    """Pixelated rows per block.  Uses padded (sublane/lane) footprints and keeps the
    worst-case (bwd, f32-conservative) double-buffered footprint under the budget."""
    def row_bytes(shape):
        return max(_block_vmem_bytes(shape, stream_dtype),
                   _block_vmem_bytes(shape, jnp.float32))
    img_row = row_bytes((1, p, w))                              # image / adv / g slabs
    pix_row = row_bytes((1, 1, w))                              # pixelated row
    pvf_row = _block_vmem_bytes((1, 1, w), jnp.float32)         # pv / dpv rows (f32)
    bwd_row = 2 * img_row + pix_row + 2 * pvf_row               # worst-case operand set
    rt = max(1, min(max(1, target_img_block_bytes // img_row),
                    max(1, vmem_budget_bytes // (2 * bwd_row)),
                    r3))
    nb = _cdiv(r3, rt)
    rt = _cdiv(r3, nb)
    return rt, nb * rt


# ----------------------------------------------------------------------------
# Pallas kernels (native NCHW layout, rows on sublanes, W on lanes)
# ----------------------------------------------------------------------------
def _pixelate_fwd_kernel(img_ref, pix_ref, pv_ref, out_ref):
    img = img_ref[...].astype(jnp.float32)       # (rt, p, W)  original pixels
    pix = pix_ref[...].astype(jnp.float32)       # (rt, 1, W)  pixelated value
    pv = pv_ref[...]                             # (rt, 1, W)  pixel variable (f32)
    out = img + pv * (pix - img)                 # == img*(1-pv) + pix*pv
    out_ref[...] = jnp.clip(out, 0.0, 1.0).astype(out_ref.dtype)


def _pixelate_bwd_kernel(g_ref, img_ref, pix_ref, pv_ref, dpv_ref):
    img = img_ref[...].astype(jnp.float32)
    pix = pix_ref[...].astype(jnp.float32)
    pv = pv_ref[...]
    g = g_ref[...].astype(jnp.float32)
    diff = pix - img
    pre = img + pv * diff
    in_range = jnp.logical_and(pre >= 0.0, pre <= 1.0)   # inclusive, like torch.clamp
    # reduce the p intra-chunk rows over the sublane axis -> (rt, 1, W), f32 accumulate
    dpv_ref[...] = jnp.sum(jnp.where(in_range, g * diff, 0.0), axis=1, keepdims=True)


def _fwd_call(img, pix_w, pv_w, *, rt):
    r3p, p, w = img.shape
    big = pl.BlockSpec((rt, p, w), lambda i: (i, 0, 0))
    row = pl.BlockSpec((rt, 1, w), lambda i: (i, 0, 0))
    blocks = [((rt, p, w), img.dtype), ((rt, 1, w), pix_w.dtype),
              ((rt, 1, w), pv_w.dtype), ((rt, p, w), img.dtype)]
    return pl.pallas_call(
        _pixelate_fwd_kernel,
        out_shape=jax.ShapeDtypeStruct((r3p, p, w), img.dtype),
        grid=(r3p // rt,),
        in_specs=[big, row, row],
        out_specs=big,
        compiler_params=pltpu.CompilerParams(
            dimension_semantics=("parallel",),
            vmem_limit_bytes=_vmem_limit(blocks),
        ),
    )(img, pix_w, pv_w)


def _bwd_call(g, img, pix_w, pv_w, *, rt):
    r3p, p, w = img.shape
    big = pl.BlockSpec((rt, p, w), lambda i: (i, 0, 0))
    row = pl.BlockSpec((rt, 1, w), lambda i: (i, 0, 0))
    blocks = [((rt, p, w), g.dtype), ((rt, p, w), img.dtype),
              ((rt, 1, w), pix_w.dtype), ((rt, 1, w), pv_w.dtype),
              ((rt, 1, w), jnp.float32)]
    return pl.pallas_call(
        _pixelate_bwd_kernel,
        out_shape=jax.ShapeDtypeStruct((r3p, 1, w), jnp.float32),
        grid=(r3p // rt,),
        in_specs=[big, big, row, row],
        out_specs=row,
        compiler_params=pltpu.CompilerParams(
            dimension_semantics=("parallel",),
            vmem_limit_bytes=_vmem_limit(blocks),
        ),
    )(g, img, pix_w, pv_w)


@functools.lru_cache(maxsize=None)
def _make_pixelate(rt):
    fwd_call = functools.partial(_fwd_call, rt=rt)
    bwd_call = functools.partial(_bwd_call, rt=rt)

    @jax.custom_vjp
    def pixelate(img, pix_w, pv_w):
        return fwd_call(img, pix_w, pv_w)

    def fwd(img, pix_w, pv_w):
        return fwd_call(img, pix_w, pv_w), (img, pix_w, pv_w)

    def bwd(res, g):
        img, pix_w, pv_w = res
        dpv = bwd_call(g.astype(img.dtype), img, pix_w, pv_w)
        # Only pv is differentiated; zero cotangents are DCE'd under jit.
        return jnp.zeros_like(img), jnp.zeros_like(pix_w), dpv

    pixelate.defvjp(fwd, bwd)
    return pixelate


# ----------------------------------------------------------------------------
# Module-level glue (faithful to the PyTorch reference, task='attack', linf)
# ----------------------------------------------------------------------------
def get_pixels(image, pixel_size):
    """image[..., ::pixel_size, ::pixel_size], detached."""
    return jax.lax.stop_gradient(image[..., ::pixel_size, ::pixel_size])


def cross_entropy(logits, targets):
    logp = jax.nn.log_softmax(logits, axis=-1)
    return -jnp.mean(jnp.take_along_axis(logp, targets[:, None], axis=1))


def make_pixel_adversary(model, *, epsilon, num_steps, step_size, pixel_size,
                         stream_dtype=jnp.bfloat16):
    """PixelAdversary.forward with task='attack', distance_metric='linf'."""

    @jax.jit
    def attack(inputs, targets, key):
        B, C, H, W = inputs.shape
        p = pixel_size
        # TODO(synk): bilinear F.interpolate path for H/W not divisible by pixel_size
        # is not implemented.
        assert H % p == 0 and W % p == 0
        Hp, Wp = H // p, W // p
        R3 = B * C * Hp

        rt, r3_pad = _choose_rows(R3, p, W, stream_dtype)
        pad = r3_pad - R3
        pixelate = _make_pixelate(rt)

        def pad_rows(x):
            return jnp.pad(x, ((0, pad), (0, 0), (0, 0))) if pad else x

        # ---- constants (hoisted out of the PGD loop) ----
        pixelated = get_pixels(inputs, p)                              # (B, C, Hp, Wp)
        # Native-layout 3-D view: (B,C,H,W) row-major == (B*C*Hp, p, W) -- free reshape.
        img3 = jax.lax.stop_gradient(inputs).reshape(R3, p, W)
        # W-expanded pixelated row (size n*p, built once).
        pix_w = jnp.broadcast_to(pixelated.reshape(R3, Wp, 1),
                                 (R3, Wp, p)).reshape(R3, 1, W)

        img_s = pad_rows(img3.astype(stream_dtype))                    # bf16 stream copy
        pix_s = pad_rows(pix_w.astype(stream_dtype))

        def expand_pv(pv):                                             # (B,C,Hp,Wp) f32
            pvw = jnp.broadcast_to(pv.reshape(R3, Wp, 1),
                                   (R3, Wp, p)).reshape(R3, 1, W)
            return pad_rows(pvw.astype(jnp.float32))

        def loss_fn(pv):
            adv = pixelate(img_s, pix_s, expand_pv(pv))                # (r3_pad, p, W)
            adv = adv[:R3].reshape(B, C, H, W)                         # free reshape
            return cross_entropy(model(adv), targets)

        # ---- PGD init (NOTE: sign(uniform[0,1)) == +1 a.s., matches torch.sign(rand)) ----
        k_scale, k_init = jax.random.split(key)
        rand_scale = jax.random.uniform(k_scale, (), dtype=inputs.dtype)
        pv = epsilon * rand_scale * jnp.sign(
            jax.random.uniform(k_init, (B, C, Hp, Wp), dtype=inputs.dtype))
        pv = jnp.clip(jnp.abs(pv), 0.0, 1.0)

        def body(_, pv_):
            g = jax.grad(loss_fn)(pv_)                    # f32 gradient
            pv_ = pv_ + step_size * jnp.sign(g)           # normalise_tensor (linf)
            pv_ = jnp.clip(pv_, -epsilon, epsilon)        # project_tensor   (linf)
            return jnp.clip(pv_, 0.0, 1.0)

        pv = jax.lax.fori_loop(0, num_steps, body, pv)

        # ---- final adversarial image: single full-f32 pass (outside the loop) ----
        adv = pixelate(pad_rows(img3), pad_rows(pix_w), expand_pv(pv))
        adv = adv[:R3].reshape(B, C, H, W)
        return jax.lax.stop_gradient(adv)

    return attack


# ----------------------------------------------------------------------------
# Main
# ----------------------------------------------------------------------------
if __name__ == "__main__":
    key = jax.random.PRNGKey(0)
    k_x, k_w, k_b, k_t, k_atk = jax.random.split(key, 5)

    B, C, H, W = 2, 4, 16, 16
    num_classes = 10
    pixel_size = 4

    x = jax.random.uniform(k_x, (B, C, H, W), dtype=jnp.float32)      # images in [0,1]
    targets = jax.random.randint(k_t, (B,), 0, num_classes)

    # Deterministic synthetic "model": a linear classifier on flattened pixels.
    Wc = 0.01 * jax.random.normal(k_w, (C * H * W, num_classes), dtype=jnp.float32)
    bc = 0.01 * jax.random.normal(k_b, (num_classes,), dtype=jnp.float32)

    def model(imgs):
        return imgs.reshape(imgs.shape[0], -1).astype(jnp.float32) @ Wc + bc

    attack = make_pixel_adversary(
        model, epsilon=8.0 / 255.0, num_steps=3, step_size=2.0 / 255.0,
        pixel_size=pixel_size)

    adv = jax.block_until_ready(attack(x, targets, k_atk))

    assert adv.shape == (B, C, H, W)
    assert adv.dtype == x.dtype
    assert bool(jnp.all(adv >= 0.0)) and bool(jnp.all(adv <= 1.0))
    print("KERNEL_OK")
</pallas_src>

<mosaic_0001>
module attributes {stable_mosaic.version = 11 : i64} {
  func.func @_pixelate_fwd_kernel(%arg0: i32, %arg1: memref<32x4x16xbf16, #tpu.memory_space<vmem>>, %arg2: memref<32x1x16xbf16, #tpu.memory_space<vmem>>, %arg3: memref<32x1x16xf32, #tpu.memory_space<vmem>>, %arg4: memref<32x4x16xbf16, #tpu.memory_space<vmem>>) attributes {dimension_semantics = [#tpu.dimension_semantics<parallel>], iteration_bounds = array<i64: 1>, scalar_prefetch = 0 : i64, scratch_operands = 0 : i64, tpu.core_type = #tpu.core_type<tc>, window_params = [{transform_indices = @transform_0, window_bounds = array<i64: 32, 4, 16>}, {transform_indices = @transform_1, window_bounds = array<i64: 32, 1, 16>}, {transform_indices = @transform_2, window_bounds = array<i64: 32, 1, 16>}, {transform_indices = @transform_3, window_bounds = array<i64: 32, 4, 16>}]} {
    %c0 = arith.constant 0 : index
    %c0_0 = arith.constant 0 : index
    %c0_1 = arith.constant 0 : index
    %0 = vector.load %arg1[%c0, %c0_0, %c0_1] : memref<32x4x16xbf16, #tpu.memory_space<vmem>>, vector<32x4x16xbf16>
    %1 = arith.extf %0 : vector<32x4x16xbf16> to vector<32x4x16xf32>
    %c0_2 = arith.constant 0 : index
    %c0_3 = arith.constant 0 : index
    %c0_4 = arith.constant 0 : index
    %2 = vector.load %arg2[%c0_2, %c0_3, %c0_4] : memref<32x1x16xbf16, #tpu.memory_space<vmem>>, vector<32x1x16xbf16>
    %3 = arith.extf %2 : vector<32x1x16xbf16> to vector<32x1x16xf32>
    %c0_5 = arith.constant 0 : index
    %c0_6 = arith.constant 0 : index
    %c0_7 = arith.constant 0 : index
    %4 = vector.load %arg3[%c0_5, %c0_6, %c0_7] : memref<32x1x16xf32, #tpu.memory_space<vmem>>, vector<32x1x16xf32>
    %5 = vector.broadcast %3 : vector<32x1x16xf32> to vector<32x4x16xf32>
    %6 = arith.subf %5, %1 : vector<32x4x16xf32>
    %7 = vector.broadcast %4 : vector<32x1x16xf32> to vector<32x4x16xf32>
    %8 = arith.mulf %7, %6 : vector<32x4x16xf32>
    %9 = arith.addf %1, %8 : vector<32x4x16xf32>
    %cst = arith.constant 0.000000e+00 : f32
    %cst_8 = arith.constant 1.000000e+00 : f32
    %10 = vector.broadcast %cst : f32 to vector<32x4x16xf32>
    %11 = arith.maximumf %10, %9 : vector<32x4x16xf32>
    %12 = vector.broadcast %cst_8 : f32 to vector<32x4x16xf32>
    %13 = arith.minimumf %12, %11 : vector<32x4x16xf32>
    %14 = arith.truncf %13 : vector<32x4x16xf32> to vector<32x4x16xbf16>
    %c0_9 = arith.constant 0 : index
    %c0_10 = arith.constant 0 : index
    %c0_11 = arith.constant 0 : index
    %15 = vector.load %arg4[%c0_9, %c0_10, %c0_11] : memref<32x4x16xbf16, #tpu.memory_space<vmem>>, vector<32x4x16xbf16>
    tpu.vector_store %arg4[%c0_9, %c0_10, %c0_11], %14 {strides = array<i32>} : memref<32x4x16xbf16, #tpu.memory_space<vmem>>, vector<32x4x16xbf16>,
    return
  }
  func.func @transform_0(%arg0: i32) -> (i32, i32, i32) {
    %c0_i32 = arith.constant 0 : i32
    %c0_i32_0 = arith.constant 0 : i32
    %c0_i32_1 = arith.constant 0 : i32
    return %arg0, %c0_i32, %c0_i32_0 : i32, i32, i32
  }
  func.func @transform_1(%arg0: i32) -> (i32, i32, i32) {
    %c0_i32 = arith.constant 0 : i32
    %c0_i32_0 = arith.constant 0 : i32
    %c0_i32_1 = arith.constant 0 : i32
    return %arg0, %c0_i32, %c0_i32_0 : i32, i32, i32
  }
  func.func @transform_2(%arg0: i32) -> (i32, i32, i32) {
    %c0_i32 = arith.constant 0 : i32
    %c0_i32_0 = arith.constant 0 : i32
    %c0_i32_1 = arith.constant 0 : i32
    return %arg0, %c0_i32, %c0_i32_0 : i32, i32, i32
  }
  func.func @transform_3(%arg0: i32) -> (i32, i32, i32) {
    %c0_i32 = arith.constant 0 : i32
    %c0_i32_0 = arith.constant 0 : i32
    %c0_i32_1 = arith.constant 0 : i32
    return %arg0, %c0_i32, %c0_i32_0 : i32, i32, i32
  }
}

module attributes {stable_mosaic.version = 11 : i64} {
  func.func @_pixelate_bwd_kernel(%arg0: i32, %arg1: memref<32x4x16xbf16, #tpu.memory_space<vmem>>, %arg2: memref<32x4x16xbf16, #tpu.memory_space<vmem>>, %arg3: memref<32x1x16xbf16, #tpu.memory_space<vmem>>, %arg4: memref<32x1x16xf32, #tpu.memory_space<vmem>>, %arg5: memref<32x1x16xf32, #tpu.memory_space<vmem>>) attributes {dimension_semantics = [#tpu.dimension_semantics<parallel>], iteration_bounds = array<i64: 1>, scalar_prefetch = 0 : i64, scratch_operands = 0 : i64, tpu.core_type = #tpu.core_type<tc>, window_params = [{transform_indices = @transform_0, window_bounds = array<i64: 32, 4, 16>}, {transform_indices = @transform_1, window_bounds = array<i64: 32, 4, 16>}, {transform_indices = @transform_2, window_bounds = array<i64: 32, 1, 16>}, {transform_indices = @transform_3, window_bounds = array<i64: 32, 1, 16>}, {transform_indices = @transform_4, window_bounds = array<i64: 32, 1, 16>}]} {
    %c0 = arith.constant 0 : index
    %c0_0 = arith.constant 0 : index
    %c0_1 = arith.constant 0 : index
    %0 = vector.load %arg2[%c0, %c0_0, %c0_1] : memref<32x4x16xbf16, #tpu.memory_space<vmem>>, vector<32x4x16xbf16>
    %1 = arith.extf %0 : vector<32x4x16xbf16> to vector<32x4x16xf32>
    %c0_2 = arith.constant 0 : index
    %c0_3 = arith.constant 0 : index
    %c0_4 = arith.constant 0 : index
    %2 = vector.load %arg3[%c0_2, %c0_3, %c0_4] : memref<32x1x16xbf16, #tpu.memory_space<vmem>>, vector<32x1x16xbf16>
    %3 = arith.extf %2 : vector<32x1x16xbf16> to vector<32x1x16xf32>
    %c0_5 = arith.constant 0 : index
    %c0_6 = arith.constant 0 : index
    %c0_7 = arith.constant 0 : index
    %4 = vector.load %arg4[%c0_5, %c0_6, %c0_7] : memref<32x1x16xf32, #tpu.memory_space<vmem>>, vector<32x1x16xf32>
    %c0_8 = arith.constant 0 : index
    %c0_9 = arith.constant 0 : index
    %c0_10 = arith.constant 0 : index
    %5 = vector.load %arg1[%c0_8, %c0_9, %c0_10] : memref<32x4x16xbf16, #tpu.memory_space<vmem>>, vector<32x4x16xbf16>
    %6 = arith.extf %5 : vector<32x4x16xbf16> to vector<32x4x16xf32>
    %7 = vector.broadcast %3 : vector<32x1x16xf32> to vector<32x4x16xf32>
    %8 = arith.subf %7, %1 : vector<32x4x16xf32>
    %9 = vector.broadcast %4 : vector<32x1x16xf32> to vector<32x4x16xf32>
    %10 = arith.mulf %9, %8 : vector<32x4x16xf32>
    %11 = arith.addf %1, %10 : vector<32x4x16xf32>
    %cst = arith.constant 0.000000e+00 : f32
    %12 = vector.broadcast %cst : f32 to vector<32x4x16xf32>
    %13 = arith.cmpf oge, %11, %12 : vector<32x4x16xf32>
    %cst_11 = arith.constant 1.000000e+00 : f32
    %14 = vector.broadcast %cst_11 : f32 to vector<32x4x16xf32>
    %15 = arith.cmpf ole, %11, %14 : vector<32x4x16xf32>
    %16 = arith.andi %13, %15 : vector<32x4x16xi1>
    %17 = arith.mulf %6, %8 : vector<32x4x16xf32>
    %cst_12 = arith.constant 0.000000e+00 : f32
    %18 = vector.broadcast %cst_12 : f32 to vector<32x4x16xf32>
    %19 = arith.select %16, %17, %18 : vector<32x4x16xi1>, vector<32x4x16xf32>
    %cst_13 = arith.constant dense<0.000000e+00> : vector<32x16xf32>
    %20 = vector.multi_reduction <add>, %19, %cst_13 [1] : vector<32x4x16xf32> to vector<32x16xf32>
    %21 = vector.shape_cast %20 : vector<32x16xf32> to vector<32x1x16xf32>
    %c0_14 = arith.constant 0 : index
    %c0_15 = arith.constant 0 : index
    %c0_16 = arith.constant 0 : index
    %22 = vector.load %arg5[%c0_14, %c0_15, %c0_16] : memref<32x1x16xf32, #tpu.memory_space<vmem>>, vector<32x1x16xf32>
    tpu.vector_store %arg5[%c0_14, %c0_15, %c0_16], %21 {strides = array<i32>} : memref<32x1x16xf32, #tpu.memory_space<vmem>>, vector<32x1x16xf32>,
    return
  }
  func.func @transform_0(%arg0: i32) -> (i32, i32, i32) {
    %c0_i32 = arith.constant 0 : i32
    %c0_i32_0 = arith.constant 0 : i32
    %c0_i32_1 = arith.constant 0 : i32
    return %arg0, %c0_i32, %c0_i32_0 : i32, i32, i32
  }
  func.func @transform_1(%arg0: i32) -> (i32, i32, i32) {
    %c0_i32 = arith.constant 0 : i32
    %c0_i32_0 = arith.constant 0 : i32
    %c0_i32_1 = arith.constant 0 : i32
    return %arg0, %c0_i32, %c0_i32_0 : i32, i32, i32
  }
  func.func @transform_2(%arg0: i32) -> (i32, i32, i32) {
    %c0_i32 = arith.constant 0 : i32
    %c0_i32_0 = arith.constant 0 : i32
    %c0_i32_1 = arith.constant 0 : i32
    return %arg0, %c0_i32, %c0_i32_0 : i32, i32, i32
  }
  func.func @transform_3(%arg0: i32) -> (i32, i32, i32) {
    %c0_i32 = arith.constant 0 : i32
    %c0_i32_0 = arith.constant 0 : i32
    %c0_i32_1 = arith.constant 0 : i32
    return %arg0, %c0_i32, %c0_i32_0 : i32, i32, i32
  }
  func.func @transform_4(%arg0: i32) -> (i32, i32, i32) {
    %c0_i32 = arith.constant 0 : i32
    %c0_i32_0 = arith.constant 0 : i32
    %c0_i32_1 = arith.constant 0 : i32
    return %arg0, %c0_i32, %c0_i32_0 : i32, i32, i32
  }
}

module attributes {stable_mosaic.version = 11 : i64} {
  func.func @_pixelate_fwd_kernel(%arg0: i32, %arg1: memref<32x4x16xf32, #tpu.memory_space<vmem>>, %arg2: memref<32x1x16xf32, #tpu.memory_space<vmem>>, %arg3: memref<32x1x16xf32, #tpu.memory_space<vmem>>, %arg4: memref<32x4x16xf32, #tpu.memory_space<vmem>>) attributes {dimension_semantics = [#tpu.dimension_semantics<parallel>], iteration_bounds = array<i64: 1>, scalar_prefetch = 0 : i64, scratch_operands = 0 : i64, tpu.core_type = #tpu.core_type<tc>, window_params = [{transform_indices = @transform_0, window_bounds = array<i64: 32, 4, 16>}, {transform_indices = @transform_1, window_bounds = array<i64: 32, 1, 16>}, {transform_indices = @transform_2, window_bounds = array<i64: 32, 1, 16>}, {transform_indices = @transform_3, window_bounds = array<i64: 32, 4, 16>}]} {
    %c0 = arith.constant 0 : index
    %c0_0 = arith.constant 0 : index
    %c0_1 = arith.constant 0 : index
    %0 = vector.load %arg1[%c0, %c0_0, %c0_1] : memref<32x4x16xf32, #tpu.memory_space<vmem>>, vector<32x4x16xf32>
    %c0_2 = arith.constant 0 : index
    %c0_3 = arith.constant 0 : index
    %c0_4 = arith.constant 0 : index
    %1 = vector.load %arg2[%c0_2, %c0_3, %c0_4] : memref<32x1x16xf32, #tpu.memory_space<vmem>>, vector<32x1x16xf32>
    %c0_5 = arith.constant 0 : index
    %c0_6 = arith.constant 0 : index
    %c0_7 = arith.constant 0 : index
    %2 = vector.load %arg3[%c0_5, %c0_6, %c0_7] : memref<32x1x16xf32, #tpu.memory_space<vmem>>, vector<32x1x16xf32>
    %3 = vector.broadcast %1 : vector<32x1x16xf32> to vector<32x4x16xf32>
    %4 = arith.subf %3, %0 : vector<32x4x16xf32>
    %5 = vector.broadcast %2 : vector<32x1x16xf32> to vector<32x4x16xf32>
    %6 = arith.mulf %5, %4 : vector<32x4x16xf32>
    %7 = arith.addf %0, %6 : vector<32x4x16xf32>
    %cst = arith.constant 0.000000e+00 : f32
    %cst_8 = arith.constant 1.000000e+00 : f32
    %8 = vector.broadcast %cst : f32 to vector<32x4x16xf32>
    %9 = arith.maximumf %8, %7 : vector<32x4x16xf32>
    %10 = vector.broadcast %cst_8 : f32 to vector<32x4x16xf32>
    %11 = arith.minimumf %10, %9 : vector<32x4x16xf32>
    %c0_9 = arith.constant 0 : index
    %c0_10 = arith.constant 0 : index
    %c0_11 = arith.constant 0 : index
    %12 = vector.load %arg4[%c0_9, %c0_10, %c0_11] : memref<32x4x16xf32, #tpu.memory_space<vmem>>, vector<32x4x16xf32>
    tpu.vector_store %arg4[%c0_9, %c0_10, %c0_11], %11 {strides = array<i32>} : memref<32x4x16xf32, #tpu.memory_space<vmem>>, vector<32x4x16xf32>,
    return
  }
  func.func @transform_0(%arg0: i32) -> (i32, i32, i32) {
    %c0_i32 = arith.constant 0 : i32
    %c0_i32_0 = arith.constant 0 : i32
    %c0_i32_1 = arith.constant 0 : i32
    return %arg0, %c0_i32, %c0_i32_0 : i32, i32, i32
  }
  func.func @transform_1(%arg0: i32) -> (i32, i32, i32) {
    %c0_i32 = arith.constant 0 : i32
    %c0_i32_0 = arith.constant 0 : i32
    %c0_i32_1 = arith.constant 0 : i32
    return %arg0, %c0_i32, %c0_i32_0 : i32, i32, i32
  }
  func.func @transform_2(%arg0: i32) -> (i32, i32, i32) {
    %c0_i32 = arith.constant 0 : i32
    %c0_i32_0 = arith.constant 0 : i32
    %c0_i32_1 = arith.constant 0 : i32
    return %arg0, %c0_i32, %c0_i32_0 : i32, i32, i32
  }
  func.func @transform_3(%arg0: i32) -> (i32, i32, i32) {
    %c0_i32 = arith.constant 0 : i32
    %c0_i32_0 = arith.constant 0 : i32
    %c0_i32_1 = arith.constant 0 : i32
    return %arg0, %c0_i32, %c0_i32_0 : i32, i32, i32
  }
}

</mosaic_0001>

<llo_original>
// kernel: jvp__.4
$region0: #{jvp__.4}
  #allocation0 [shape = 'u32[]', space=smem, size = 0x4, offset = 0x4, fixed_abs, tag = 'smem constant byte address 0x4 - core index']
  #allocation1 [shape = 'u32[72,128]{1,0:T(1,128)}', space=vmem, size = 0x9000, scoped, tag = 'internal scratch']
  %s0 = inlined_call_operand.vmem [shape: bf16[32,4,16], index: 0, kind: input, shape index: {}]
  %s1 = inlined_call_operand.vmem [shape: bf16[32,1,16], index: 1, kind: input, shape index: {}]
  %s2 = inlined_call_operand.vmem [shape: f32[32,1,16], index: 2, kind: input, shape index: {}]
  %s3 = inlined_call_operand.vmem [shape: bf16[32,4,16], index: 3, kind: output, shape index: {}]
  %s4 = sld [smem:[#allocation0]]
  $region22: #{jvp__.4} parent=0
    _
  %s6 = ssub.s32 1, %s4
  %s7 = scalar_select 0, %s6, %s4
  // Predicated region
  $region2: #{jvp__.4} parent=0 // pred_check
    _
  $region3: #{jvp__.4} parent=0 // pred_check_branch
    %9 = sbr.rel (0) target = $region5
  $region4: #{jvp__.4} parent=0 // pred_region
    _
  $region5: #{jvp__.4} parent=0 // pred_fallthru
    _
  // Predicated region
  $region6: #{jvp__.4} parent=0 // pred_check
    _
  $region7: #{jvp__.4} parent=0 // pred_check_branch
    %11 = sbr.rel (0) target = $region9
  $region8: #{jvp__.4} parent=0 // pred_region
    _
  $region9: #{jvp__.4} parent=0 // pred_fallthru
    _
  // Predicated region
  $region10: #{jvp__.4} parent=0 // pred_check
    _
  $region11: #{jvp__.4} parent=0 // pred_check_branch
    %13 = sbr.rel (0) target = $region13
  $region12: #{jvp__.4} parent=0 // pred_region
    _
  $region13: #{jvp__.4} parent=0 // pred_fallthru
    _
  %v14 = vld [vmem:[%s0] sm:$0x3]
  %v15 = vld [vmem:[%s0 + $0x2] sm:$0x3]
  %v16 = vld [vmem:[%s0 + $0x4] sm:$0x3]
  %v17 = vld [vmem:[%s0 + $0x6] sm:$0x3]
  %v18 = vld [vmem:[%s0 + $0x8] sm:$0x3]
  %v19 = vld [vmem:[%s0 + $0xa] sm:$0x3]
  %v20 = vld [vmem:[%s0 + $0xc] sm:$0x3]
  %v21 = vld [vmem:[%s0 + $0xe] sm:$0x3]
  %v22 = vld [vmem:[%s0 + $0x10] sm:$0x3]
  %v23 = vld [vmem:[%s0 + $0x12] sm:$0x3]
  %v24 = vld [vmem:[%s0 + $0x14] sm:$0x3]
  %v25 = vld [vmem:[%s0 + $0x16] sm:$0x3]
  %v26 = vld [vmem:[%s0 + $0x18] sm:$0x3]
  %v27 = vld [vmem:[%s0 + $0x1a] sm:$0x3]
  %v28 = vld [vmem:[%s0 + $0x1c] sm:$0x3]
  %v29 = vld [vmem:[%s0 + $0x1e] sm:$0x3]
  %v30 = vld [vmem:[%s0 + $0x20] sm:$0x3]
  %v31 = vld [vmem:[%s0 + $0x22] sm:$0x3]
  %v32 = vld [vmem:[%s0 + $0x24] sm:$0x3]
  %v33 = vld [vmem:[%s0 + $0x26] sm:$0x3]
  %v34 = vld [vmem:[%s0 + $0x28] sm:$0x3]
  %v35 = vld [vmem:[%s0 + $0x2a] sm:$0x3]
  %v36 = vld [vmem:[%s0 + $0x2c] sm:$0x3]
  %v37 = vld [vmem:[%s0 + $0x2e] sm:$0x3]
  %v38 = vld [vmem:[%s0 + $0x30] sm:$0x3]
  %v39 = vld [vmem:[%s0 + $0x32] sm:$0x3]
  %v40 = vld [vmem:[%s0 + $0x34] sm:$0x3]
  %v41 = vld [vmem:[%s0 + $0x36] sm:$0x3]
  %v42 = vld [vmem:[%s0 + $0x38] sm:$0x3]
  %v43 = vld [vmem:[%s0 + $0x3a] sm:$0x3]
  %v44 = vld [vmem:[%s0 + $0x3c] sm:$0x3]
  %v45 = vld [vmem:[%s0 + $0x3e] sm:$0x3]
  %v46 = vunpack.c.l.bf16 %v14
  %v47 = vunpack.c.l.bf16 %v15
  %v48 = vunpack.c.l.bf16 %v16
  %v49 = vunpack.c.l.bf16 %v17
  %v50 = vunpack.c.l.bf16 %v18
  %v51 = vunpack.c.l.bf16 %v19
  %v52 = vunpack.c.l.bf16 %v20
  %v53 = vunpack.c.l.bf16 %v21
  %v54 = vunpack.c.l.bf16 %v22
  %v55 = vunpack.c.l.bf16 %v23
  %v56 = vunpack.c.l.bf16 %v24
  %v57 = vunpack.c.l.bf16 %v25
  %v58 = vunpack.c.l.bf16 %v26
  %v59 = vunpack.c.l.bf16 %v27
  %v60 = vunpack.c.l.bf16 %v28
  %v61 = vunpack.c.l.bf16 %v29
  %v62 = vunpack.c.l.bf16 %v30
  %v63 = vunpack.c.l.bf16 %v31
  %v64 = vunpack.c.l.bf16 %v32
  %v65 = vunpack.c.l.bf16 %v33
  %v66 = vunpack.c.l.bf16 %v34
  %v67 = vunpack.c.l.bf16 %v35
  %v68 = vunpack.c.l.bf16 %v36
  %v69 = vunpack.c.l.bf16 %v37
  %v70 = vunpack.c.l.bf16 %v38
  %v71 = vunpack.c.l.bf16 %v39
  %v72 = vunpack.c.l.bf16 %v40
  %v73 = vunpack.c.l.bf16 %v41
  %v74 = vunpack.c.l.bf16 %v42
  %v75 = vunpack.c.l.bf16 %v43
  %v76 = vunpack.c.l.bf16 %v44
  %v77 = vunpack.c.l.bf16 %v45
  %v78 = vld [vmem:[%s1] sm:$0x1]
  %v79 = vld [vmem:[%s1 + $0x1] sm:$0x1]
  %v80 = vld [vmem:[%s1 + $0x2] sm:$0x1]
  %v81 = vld [vmem:[%s1 + $0x3] sm:$0x1]
  %v82 = vld [vmem:[%s1 + $0x4] sm:$0x1]
  %v83 = vld [vmem:[%s1 + $0x5] sm:$0x1]
  %v84 = vld [vmem:[%s1 + $0x6] sm:$0x1]
  %v85 = vld [vmem:[%s1 + $0x7] sm:$0x1]
  %v86 = vld [vmem:[%s1 + $0x8] sm:$0x1]
  %v87 = vld [vmem:[%s1 + $0x9] sm:$0x1]
  %v88 = vld [vmem:[%s1 + $0xa] sm:$0x1]
  %v89 = vld [vmem:[%s1 + $0xb] sm:$0x1]
  %v90 = vld [vmem:[%s1 + $0xc] sm:$0x1]
  %v91 = vld [vmem:[%s1 + $0xd] sm:$0x1]
  %v92 = vld [vmem:[%s1 + $0xe] sm:$0x1]
  %v93 = vld [vmem:[%s1 + $0xf] sm:$0x1]
  %v94 = vld [vmem:[%s1 + $0x10] sm:$0x1]
  %v95 = vld [vmem:[%s1 + $0x11] sm:$0x1]
  %v96 = vld [vmem:[%s1 + $0x12] sm:$0x1]
  %v97 = vld [vmem:[%s1 + $0x13] sm:$0x1]
  %v98 = vld [vmem:[%s1 + $0x14] sm:$0x1]
  %v99 = vld [vmem:[%s1 + $0x15] sm:$0x1]
  %v100 = vld [vmem:[%s1 + $0x16] sm:$0x1]
  %v101 = vld [vmem:[%s1 + $0x17] sm:$0x1]
  %v102 = vld [vmem:[%s1 + $0x18] sm:$0x1]
  %v103 = vld [vmem:[%s1 + $0x19] sm:$0x1]
  %v104 = vld [vmem:[%s1 + $0x1a] sm:$0x1]
  %v105 = vld [vmem:[%s1 + $0x1b] sm:$0x1]
  %v106 = vld [vmem:[%s1 + $0x1c] sm:$0x1]
  %v107 = vld [vmem:[%s1 + $0x1d] sm:$0x1]
  %v108 = vld [vmem:[%s1 + $0x1e] sm:$0x1]
  %v109 = vld [vmem:[%s1 + $0x1f] sm:$0x1]
  %v110 = vunpack.c.l.bf16 %v78
  %v111 = vunpack.c.l.bf16 %v79
  %v112 = vunpack.c.l.bf16 %v80
  %v113 = vunpack.c.l.bf16 %v81
  %v114 = vunpack.c.l.bf16 %v82
  %v115 = vunpack.c.l.bf16 %v83
  %v116 = vunpack.c.l.bf16 %v84
  %v117 = vunpack.c.l.bf16 %v85
  %v118 = vunpack.c.l.bf16 %v86
  %v119 = vunpack.c.l.bf16 %v87
  %v120 = vunpack.c.l.bf16 %v88
  %v121 = vunpack.c.l.bf16 %v89
  %v122 = vunpack.c.l.bf16 %v90
  %v123 = vunpack.c.l.bf16 %v91
  %v124 = vunpack.c.l.bf16 %v92
  %v125 = vunpack.c.l.bf16 %v93
  %v126 = vunpack.c.l.bf16 %v94
  %v127 = vunpack.c.l.bf16 %v95
  %v128 = vunpack.c.l.bf16 %v96
  %v129 = vunpack.c.l.bf16 %v97
  %v130 = vunpack.c.l.bf16 %v98
  %v131 = vunpack.c.l.bf16 %v99
  %v132 = vunpack.c.l.bf16 %v100
  %v133 = vunpack.c.l.bf16 %v101
  %v134 = vunpack.c.l.bf16 %v102
  %v135 = vunpack.c.l.bf16 %v103
  %v136 = vunpack.c.l.bf16 %v104
  %v137 = vunpack.c.l.bf16 %v105
  %v138 = vunpack.c.l.bf16 %v106
  %v139 = vunpack.c.l.bf16 %v107
  %v140 = vunpack.c.l.bf16 %v108
  %v141 = vunpack.c.l.bf16 %v109
  %v142 = vld [vmem:[%s2] sm:$0x1]
  %v143 = vld [vmem:[%s2 + $0x1] sm:$0x1]
  %v144 = vld [vmem:[%s2 + $0x2] sm:$0x1]
  %v145 = vld [vmem:[%s2 + $0x3] sm:$0x1]
  %v146 = vld [vmem:[%s2 + $0x4] sm:$0x1]
  %v147 = vld [vmem:[%s2 + $0x5] sm:$0x1]
  %v148 = vld [vmem:[%s2 + $0x6] sm:$0x1]
  %v149 = vld [vmem:[%s2 + $0x7] sm:$0x1]
  %v150 = vld [vmem:[%s2 + $0x8] sm:$0x1]
  %v151 = vld [vmem:[%s2 + $0x9] sm:$0x1]
  %v152 = vld [vmem:[%s2 + $0xa] sm:$0x1]
  %v153 = vld [vmem:[%s2 + $0xb] sm:$0x1]
  %v154 = vld [vmem:[%s2 + $0xc] sm:$0x1]
  %v155 = vld [vmem:[%s2 + $0xd] sm:$0x1]
  %v156 = vld [vmem:[%s2 + $0xe] sm:$0x1]
  %v157 = vld [vmem:[%s2 + $0xf] sm:$0x1]
  %v158 = vld [vmem:[%s2 + $0x10] sm:$0x1]
  %v159 = vld [vmem:[%s2 + $0x11] sm:$0x1]
  %v160 = vld [vmem:[%s2 + $0x12] sm:$0x1]
  %v161 = vld [vmem:[%s2 + $0x13] sm:$0x1]
  %v162 = vld [vmem:[%s2 + $0x14] sm:$0x1]
  %v163 = vld [vmem:[%s2 + $0x15] sm:$0x1]
  %v164 = vld [vmem:[%s2 + $0x16] sm:$0x1]
  %v165 = vld [vmem:[%s2 + $0x17] sm:$0x1]
  %v166 = vld [vmem:[%s2 + $0x18] sm:$0x1]
  %v167 = vld [vmem:[%s2 + $0x19] sm:$0x1]
  %v168 = vld [vmem:[%s2 + $0x1a] sm:$0x1]
  %v169 = vld [vmem:[%s2 + $0x1b] sm:$0x1]
  %v170 = vld [vmem:[%s2 + $0x1c] sm:$0x1]
  %v171 = vld [vmem:[%s2 + $0x1d] sm:$0x1]
  %v172 = vld [vmem:[%s2 + $0x1e] sm:$0x1]
  %v173 = vld [vmem:[%s2 + $0x1f] sm:$0x1]
  %v174 = vperm.slane %v110, 0
  %v175 = vperm.slane %v111, 0
  %v176 = vperm.slane %v112, 0
  %v177 = vperm.slane %v113, 0
  %v178 = vperm.slane %v114, 0
  %v179 = vperm.slane %v115, 0
  %v180 = vperm.slane %v116, 0
  %v181 = vperm.slane %v117, 0
  %v182 = vperm.slane %v118, 0
  %v183 = vperm.slane %v119, 0
  %v184 = vperm.slane %v120, 0
  %v185 = vperm.slane %v121, 0
  %v186 = vperm.slane %v122, 0
  %v187 = vperm.slane %v123, 0
  %v188 = vperm.slane %v124, 0
  %v189 = vperm.slane %v125, 0
  %v190 = vperm.slane %v126, 0
  %v191 = vperm.slane %v127, 0
  %v192 = vperm.slane %v128, 0
  %v193 = vperm.slane %v129, 0
  %v194 = vperm.slane %v130, 0
  %v195 = vperm.slane %v131, 0
  %v196 = vperm.slane %v132, 0
  %v197 = vperm.slane %v133, 0
  %v198 = vperm.slane %v134, 0
  %v199 = vperm.slane %v135, 0
  %v200 = vperm.slane %v136, 0
  %v201 = vperm.slane %v137, 0
  %v202 = vperm.slane %v138, 0
  %v203 = vperm.slane %v139, 0
  %v204 = vperm.slane %v140, 0
  %v205 = vperm.slane %v141, 0
  %v206 = vsub.f32 %v174, %v46
  %v207 = vsub.f32 %v175, %v47
  %v208 = vsub.f32 %v176, %v48
  %v209 = vsub.f32 %v177, %v49
  %v210 = vsub.f32 %v178, %v50
  %v211 = vsub.f32 %v179, %v51
  %v212 = vsub.f32 %v180, %v52
  %v213 = vsub.f32 %v181, %v53
  %v214 = vsub.f32 %v182, %v54
  %v215 = vsub.f32 %v183, %v55
  %v216 = vsub.f32 %v184, %v56
  %v217 = vsub.f32 %v185, %v57
  %v218 = vsub.f32 %v186, %v58
  %v219 = vsub.f32 %v187, %v59
  %v220 = vsub.f32 %v188, %v60
  %v221 = vsub.f32 %v189, %v61
  %v222 = vsub.f32 %v190, %v62
  %v223 = vsub.f32 %v191, %v63
  %v224 = vsub.f32 %v192, %v64
  %v225 = vsub.f32 %v193, %v65
  %v226 = vsub.f32 %v194, %v66
  %v227 = vsub.f32 %v195, %v67
  %v228 = vsub.f32 %v196, %v68
  %v229 = vsub.f32 %v197, %v69
  %v230 = vsub.f32 %v198, %v70
  %v231 = vsub.f32 %v199, %v71
  %v232 = vsub.f32 %v200, %v72
  %v233 = vsub.f32 %v201, %v73
  %v234 = vsub.f32 %v202, %v74
  %v235 = vsub.f32 %v203, %v75
  %v236 = vsub.f32 %v204, %v76
  %v237 = vsub.f32 %v205, %v77
  %v270 = vperm.slane %v142, 0
  %v271 = vperm.slane %v143, 0
  %v272 = vperm.slane %v144, 0
  %v273 = vperm.slane %v145, 0
  %v274 = vperm.slane %v146, 0
  %v275 = vperm.slane %v147, 0
  %v276 = vperm.slane %v148, 0
  %v277 = vperm.slane %v149, 0
  %v278 = vperm.slane %v150, 0
  %v279 = vperm.slane %v151, 0
  %v280 = vperm.slane %v152, 0
  %v281 = vperm.slane %v153, 0
  %v282 = vperm.slane %v154, 0
  %v283 = vperm.slane %v155, 0
  %v284 = vperm.slane %v156, 0
  %v285 = vperm.slane %v157, 0
  %v286 = vperm.slane %v158, 0
  %v287 = vperm.slane %v159, 0
  %v288 = vperm.slane %v160, 0
  %v289 = vperm.slane %v161, 0
  %v290 = vperm.slane %v162, 0
  %v291 = vperm.slane %v163, 0
  %v292 = vperm.slane %v164, 0
  %v293 = vperm.slane %v165, 0
  %v294 = vperm.slane %v166, 0
  %v295 = vperm.slane %v167, 0
  %v296 = vperm.slane %v168, 0
  %v297 = vperm.slane %v169, 0
  %v298 = vperm.slane %v170, 0
  %v299 = vperm.slane %v171, 0
  %v300 = vperm.slane %v172, 0
  %v301 = vperm.slane %v173, 0
  %v334 = vmul.f32 %v270, %v206
  %v335 = vmul.f32 %v271, %v207
  %v336 = vmul.f32 %v272, %v208
  %v337 = vmul.f32 %v273, %v209
  %v338 = vmul.f32 %v274, %v210
  %v339 = vmul.f32 %v275, %v211
  %v340 = vmul.f32 %v276, %v212
  %v341 = vmul.f32 %v277, %v213
  %v342 = vmul.f32 %v278, %v214
  %v343 = vmul.f32 %v279, %v215
  %v344 = vmul.f32 %v280, %v216
  %v345 = vmul.f32 %v281, %v217
  %v346 = vmul.f32 %v282, %v218
  %v347 = vmul.f32 %v283, %v219
  %v348 = vmul.f32 %v284, %v220
  %v349 = vmul.f32 %v285, %v221
  %v350 = vmul.f32 %v286, %v222
  %v351 = vmul.f32 %v287, %v223
  %v352 = vmul.f32 %v288, %v224
  %v353 = vmul.f32 %v289, %v225
  %v354 = vmul.f32 %v290, %v226
  %v355 = vmul.f32 %v291, %v227
  %v356 = vmul.f32 %v292, %v228
  %v357 = vmul.f32 %v293, %v229
  %v358 = vmul.f32 %v294, %v230
  %v359 = vmul.f32 %v295, %v231
  %v360 = vmul.f32 %v296, %v232
  %v361 = vmul.f32 %v297, %v233
  %v362 = vmul.f32 %v298, %v234
  %v363 = vmul.f32 %v299, %v235
  %v364 = vmul.f32 %v300, %v236
  %v365 = vmul.f32 %v301, %v237
  %v366 = vadd.f32 %v46, %v334
  %v367 = vadd.f32 %v47, %v335
  %v368 = vadd.f32 %v48, %v336
  %v369 = vadd.f32 %v49, %v337
  %v370 = vadd.f32 %v50, %v338
  %v371 = vadd.f32 %v51, %v339
  %v372 = vadd.f32 %v52, %v340
  %v373 = vadd.f32 %v53, %v341
  %v374 = vadd.f32 %v54, %v342
  %v375 = vadd.f32 %v55, %v343
  %v376 = vadd.f32 %v56, %v344
  %v377 = vadd.f32 %v57, %v345
  %v378 = vadd.f32 %v58, %v346
  %v379 = vadd.f32 %v59, %v347
  %v380 = vadd.f32 %v60, %v348
  %v381 = vadd.f32 %v61, %v349
  %v382 = vadd.f32 %v62, %v350
  %v383 = vadd.f32 %v63, %v351
  %v384 = vadd.f32 %v64, %v352
  %v385 = vadd.f32 %v65, %v353
  %v386 = vadd.f32 %v66, %v354
  %v387 = vadd.f32 %v67, %v355
  %v388 = vadd.f32 %v68, %v356
  %v389 = vadd.f32 %v69, %v357
  %v390 = vadd.f32 %v70, %v358
  %v391 = vadd.f32 %v71, %v359
  %v392 = vadd.f32 %v72, %v360
  %v393 = vadd.f32 %v73, %v361
  %v394 = vadd.f32 %v74, %v362
  %v395 = vadd.f32 %v75, %v363
  %v396 = vadd.f32 %v76, %v364
  %v397 = vadd.f32 %v77, %v365
  %v398 = vmax.f32 %v366, 0.0
  %v399 = vmax.f32 %v367, 0.0
  %v400 = vmax.f32 %v368, 0.0
  %v401 = vmax.f32 %v369, 0.0
  %v402 = vmax.f32 %v370, 0.0
  %v403 = vmax.f32 %v371, 0.0
  %v404 = vmax.f32 %v372, 0.0
  %v405 = vmax.f32 %v373, 0.0
  %v406 = vmax.f32 %v374, 0.0
  %v407 = vmax.f32 %v375, 0.0
  %v408 = vmax.f32 %v376, 0.0
  %v409 = vmax.f32 %v377, 0.0
  %v410 = vmax.f32 %v378, 0.0
  %v411 = vmax.f32 %v379, 0.0
  %v412 = vmax.f32 %v380, 0.0
  %v413 = vmax.f32 %v381, 0.0
  %v414 = vmax.f32 %v382, 0.0
  %v415 = vmax.f32 %v383, 0.0
  %v416 = vmax.f32 %v384, 0.0
  %v417 = vmax.f32 %v385, 0.0
  %v418 = vmax.f32 %v386, 0.0
  %v419 = vmax.f32 %v387, 0.0
  %v420 = vmax.f32 %v388, 0.0
  %v421 = vmax.f32 %v389, 0.0
  %v422 = vmax.f32 %v390, 0.0
  %v423 = vmax.f32 %v391, 0.0
  %v424 = vmax.f32 %v392, 0.0
  %v425 = vmax.f32 %v393, 0.0
  %v426 = vmax.f32 %v394, 0.0
  %v427 = vmax.f32 %v395, 0.0
  %v428 = vmax.f32 %v396, 0.0
  %v429 = vmax.f32 %v397, 0.0
  %v430 = vmin.f32 %v398, 1.0
  %v431 = vmin.f32 %v399, 1.0
  %v432 = vmin.f32 %v400, 1.0
  %v433 = vmin.f32 %v401, 1.0
  %v434 = vmin.f32 %v402, 1.0
  %v435 = vmin.f32 %v403, 1.0
  %v436 = vmin.f32 %v404, 1.0
  %v437 = vmin.f32 %v405, 1.0
  %v438 = vmin.f32 %v406, 1.0
  %v439 = vmin.f32 %v407, 1.0
  %v440 = vmin.f32 %v408, 1.0
  %v441 = vmin.f32 %v409, 1.0
  %v442 = vmin.f32 %v410, 1.0
  %v443 = vmin.f32 %v411, 1.0
  %v444 = vmin.f32 %v412, 1.0
  %v445 = vmin.f32 %v413, 1.0
  %v446 = vmin.f32 %v414, 1.0
  %v447 = vmin.f32 %v415, 1.0
  %v448 = vmin.f32 %v416, 1.0
  %v449 = vmin.f32 %v417, 1.0
  %v450 = vmin.f32 %v418, 1.0
  %v451 = vmin.f32 %v419, 1.0
  %v452 = vmin.f32 %v420, 1.0
  %v453 = vmin.f32 %v421, 1.0
  %v454 = vmin.f32 %v422, 1.0
  %v455 = vmin.f32 %v423, 1.0
  %v456 = vmin.f32 %v424, 1.0
  %v457 = vmin.f32 %v425, 1.0
  %v458 = vmin.f32 %v426, 1.0
  %v459 = vmin.f32 %v427, 1.0
  %v460 = vmin.f32 %v428, 1.0
  %v461 = vmin.f32 %v429, 1.0
  %v462 = vpack.c.bf16 %v430, %v430
  %v463 = vpack.c.bf16 %v431, %v431
  %v464 = vpack.c.bf16 %v432, %v432
  %v465 = vpack.c.bf16 %v433, %v433
  %v466 = vpack.c.bf16 %v434, %v434
  %v467 = vpack.c.bf16 %v435, %v435
  %v468 = vpack.c.bf16 %v436, %v436
  %v469 = vpack.c.bf16 %v437, %v437
  %v470 = vpack.c.bf16 %v438, %v438
  %v471 = vpack.c.bf16 %v439, %v439
  %v472 = vpack.c.bf16 %v440, %v440
  %v473 = vpack.c.bf16 %v441, %v441
  %v474 = vpack.c.bf16 %v442, %v442
  %v475 = vpack.c.bf16 %v443, %v443
  %v476 = vpack.c.bf16 %v444, %v444
  %v477 = vpack.c.bf16 %v445, %v445
  %v478 = vpack.c.bf16 %v446, %v446
  %v479 = vpack.c.bf16 %v447, %v447
  %v480 = vpack.c.bf16 %v448, %v448
  %v481 = vpack.c.bf16 %v449, %v449
  %v482 = vpack.c.bf16 %v450, %v450
  %v483 = vpack.c.bf16 %v451, %v451
  %v484 = vpack.c.bf16 %v452, %v452
  %v485 = vpack.c.bf16 %v453, %v453
  %v486 = vpack.c.bf16 %v454, %v454
  %v487 = vpack.c.bf16 %v455, %v455
  %v488 = vpack.c.bf16 %v456, %v456
  %v489 = vpack.c.bf16 %v457, %v457
  %v490 = vpack.c.bf16 %v458, %v458
  %v491 = vpack.c.bf16 %v459, %v459
  %v492 = vpack.c.bf16 %v460, %v460
  %v493 = vpack.c.bf16 %v461, %v461
  %vm494 = vcmask 123904
  %495 = vst.msk [vmem:[%s3] sm:$0x3] %vm494, %v462
  %496 = vst.msk [vmem:[%s3 + $0x2] sm:$0x3] %vm494, %v463
  %497 = vst.msk [vmem:[%s3 + $0x4] sm:$0x3] %vm494, %v464
  %498 = vst.msk [vmem:[%s3 + $0x6] sm:$0x3] %vm494, %v465
  %499 = vst.msk [vmem:[%s3 + $0x8] sm:$0x3] %vm494, %v466
  %500 = vst.msk [vmem:[%s3 + $0xa] sm:$0x3] %vm494, %v467
  %501 = vst.msk [vmem:[%s3 + $0xc] sm:$0x3] %vm494, %v468
  %502 = vst.msk [vmem:[%s3 + $0xe] sm:$0x3] %vm494, %v469
  %503 = vst.msk [vmem:[%s3 + $0x10] sm:$0x3] %vm494, %v470
  %504 = vst.msk [vmem:[%s3 + $0x12] sm:$0x3] %vm494, %v471
  %505 = vst.msk [vmem:[%s3 + $0x14] sm:$0x3] %vm494, %v472
  %506 = vst.msk [vmem:[%s3 + $0x16] sm:$0x3] %vm494, %v473
  %507 = vst.msk [vmem:[%s3 + $0x18] sm:$0x3] %vm494, %v474
  %508 = vst.msk [vmem:[%s3 + $0x1a] sm:$0x3] %vm494, %v475
  %509 = vst.msk [vmem:[%s3 + $0x1c] sm:$0x3] %vm494, %v476
  %510 = vst.msk [vmem:[%s3 + $0x1e] sm:$0x3] %vm494, %v477
  %511 = vst.msk [vmem:[%s3 + $0x20] sm:$0x3] %vm494, %v478
  %512 = vst.msk [vmem:[%s3 + $0x22] sm:$0x3] %vm494, %v479
  %513 = vst.msk [vmem:[%s3 + $0x24] sm:$0x3] %vm494, %v480
  %514 = vst.msk [vmem:[%s3 + $0x26] sm:$0x3] %vm494, %v481
  %515 = vst.msk [vmem:[%s3 + $0x28] sm:$0x3] %vm494, %v482
  %516 = vst.msk [vmem:[%s3 + $0x2a] sm:$0x3] %vm494, %v483
  %517 = vst.msk [vmem:[%s3 + $0x2c] sm:$0x3] %vm494, %v484
  %518 = vst.msk [vmem:[%s3 + $0x2e] sm:$0x3] %vm494, %v485
  %519 = vst.msk [vmem:[%s3 + $0x30] sm:$0x3] %vm494, %v486
  %520 = vst.msk [vmem:[%s3 + $0x32] sm:$0x3] %vm494, %v487
  %521 = vst.msk [vmem:[%s3 + $0x34] sm:$0x3] %vm494, %v488
  %522 = vst.msk [vmem:[%s3 + $0x36] sm:$0x3] %vm494, %v489
  %523 = vst.msk [vmem:[%s3 + $0x38] sm:$0x3] %vm494, %v490
  %524 = vst.msk [vmem:[%s3 + $0x3a] sm:$0x3] %vm494, %v491
  %525 = vst.msk [vmem:[%s3 + $0x3c] sm:$0x3] %vm494, %v492
  %526 = vst.msk [vmem:[%s3 + $0x3e] sm:$0x3] %vm494, %v493
  // Predicated region
  $region14: #{jvp__.4} parent=0 // pred_check
    _
  $region15: #{jvp__.4} parent=0 // pred_check_branch
    %528 = sbr.rel (0) target = $region17
  $region16: #{jvp__.4} parent=0 // pred_region
    _
  $region17: #{jvp__.4} parent=0 // pred_fallthru
    _
  // Predicated region
  $region18: #{jvp__.4} parent=0 // pred_check
    _
  $region19: #{jvp__.4} parent=0 // pred_check_branch
    %530 = sbr.rel (0) target = $region21
  $region20: #{jvp__.4} parent=0 // pred_region
    _
  $region21: #{jvp__.4} parent=0 // pred_fallthru
    _

// kernel: attack.1
$region0: #{attack.1}
  #allocation0 [shape = 'u32[]', space=smem, size = 0x4, offset = 0x4, fixed_abs, tag = 'smem constant byte address 0x4 - core index']
  #allocation1 [shape = 'u32[72,128]{1,0:T(1,128)}', space=vmem, size = 0x9000, scoped, tag = 'internal scratch']
  %s0 = inlined_call_operand.vmem [shape: f32[32,4,16], index: 0, kind: input, shape index: {}]
  %s1 = inlined_call_operand.vmem [shape: f32[32,1,16], index: 1, kind: input, shape index: {}]
  %s2 = inlined_call_operand.vmem [shape: f32[32,1,16], index: 2, kind: input, shape index: {}]
  %s3 = inlined_call_operand.hbm [shape: f32[32,4,16], index: 3, kind: output, shape index: {}]
  %s4 = sld [smem:[#allocation0]]
  $region22: #{attack.1} parent=0
    _
  %s6 = ssub.s32 1, %s4
  %s7 = scalar_select 0, %s6, %s4
  $region1: #{attack.1} parent=0
    #allocation2 [shape = 'u8[65536]{0}', space=vmem, size = 0x10000, scoped, tag = 'output window, operand 0, single buffered']
    #allocation3 [shape = 's32[1]{0}', space=sflag, size = 0x4, scoped, tag = 'scoped memory for attack.1']
    %8 = vsyncpa [#allocation3], 0
    // Predicated region
    $region2: #{attack.1} parent=1 // pred_check
      _
    $region3: #{attack.1} parent=1 // pred_check_branch
      %10 = sbr.rel (0) target = $region5
    $region4: #{attack.1} parent=1 // pred_region
      _
    $region5: #{attack.1} parent=1 // pred_fallthru
      _
    // Predicated region
    $region6: #{attack.1} parent=1 // pred_check
      _
    $region7: #{attack.1} parent=1 // pred_check_branch
      %12 = sbr.rel (0) target = $region9
    $region8: #{attack.1} parent=1 // pred_region
      _
    $region9: #{attack.1} parent=1 // pred_fallthru
      _
    // Predicated region
    $region10: #{attack.1} parent=1 // pred_check
      _
    $region11: #{attack.1} parent=1 // pred_check_branch
      %14 = sbr.rel (0) target = $region13
    $region12: #{attack.1} parent=1 // pred_region
      _
    $region13: #{attack.1} parent=1 // pred_fallthru
      _
    %v15 = vld [vmem:[%s0] sm:$0xf]
    %v16 = vld [vmem:[%s0 + $0x4] sm:$0xf]
    %v17 = vld [vmem:[%s0 + $0x8] sm:$0xf]
    %v18 = vld [vmem:[%s0 + $0xc] sm:$0xf]
    %v19 = vld [vmem:[%s0 + $0x10] sm:$0xf]
    %v20 = vld [vmem:[%s0 + $0x14] sm:$0xf]
    %v21 = vld [vmem:[%s0 + $0x18] sm:$0xf]
    %v22 = vld [vmem:[%s0 + $0x1c] sm:$0xf]
    %v23 = vld [vmem:[%s0 + $0x20] sm:$0xf]
    %v24 = vld [vmem:[%s0 + $0x24] sm:$0xf]
    %v25 = vld [vmem:[%s0 + $0x28] sm:$0xf]
    %v26 = vld [vmem:[%s0 + $0x2c] sm:$0xf]
    %v27 = vld [vmem:[%s0 + $0x30] sm:$0xf]
    %v28 = vld [vmem:[%s0 + $0x34] sm:$0xf]
    %v29 = vld [vmem:[%s0 + $0x38] sm:$0xf]
    %v30 = vld [vmem:[%s0 + $0x3c] sm:$0xf]
    %v31 = vld [vmem:[%s0 + $0x40] sm:$0xf]
    %v32 = vld [vmem:[%s0 + $0x44] sm:$0xf]
    %v33 = vld [vmem:[%s0 + $0x48] sm:$0xf]
    %v34 = vld [vmem:[%s0 + $0x4c] sm:$0xf]
    %v35 = vld [vmem:[%s0 + $0x50] sm:$0xf]
    %v36 = vld [vmem:[%s0 + $0x54] sm:$0xf]
    %v37 = vld [vmem:[%s0 + $0x58] sm:$0xf]
    %v38 = vld [vmem:[%s0 + $0x5c] sm:$0xf]
    %v39 = vld [vmem:[%s0 + $0x60] sm:$0xf]
    %v40 = vld [vmem:[%s0 + $0x64] sm:$0xf]
    %v41 = vld [vmem:[%s0 + $0x68] sm:$0xf]
    %v42 = vld [vmem:[%s0 + $0x6c] sm:$0xf]
    %v43 = vld [vmem:[%s0 + $0x70] sm:$0xf]
    %v44 = vld [vmem:[%s0 + $0x74] sm:$0xf]
    %v45 = vld [vmem:[%s0 + $0x78] sm:$0xf]
    %v46 = vld [vmem:[%s0 + $0x7c] sm:$0xf]
    %v47 = vld [vmem:[%s1] sm:$0x1]
    %v48 = vld [vmem:[%s1 + $0x1] sm:$0x1]
    %v49 = vld [vmem:[%s1 + $0x2] sm:$0x1]
    %v50 = vld [vmem:[%s1 + $0x3] sm:$0x1]
    %v51 = vld [vmem:[%s1 + $0x4] sm:$0x1]
    %v52 = vld [vmem:[%s1 + $0x5] sm:$0x1]
    %v53 = vld [vmem:[%s1 + $0x6] sm:$0x1]
    %v54 = vld [vmem:[%s1 + $0x7] sm:$0x1]
    %v55 = vld [vmem:[%s1 + $0x8] sm:$0x1]
    %v56 = vld [vmem:[%s1 + $0x9] sm:$0x1]
    %v57 = vld [vmem:[%s1 + $0xa] sm:$0x1]
    %v58 = vld [vmem:[%s1 + $0xb] sm:$0x1]
    %v59 = vld [vmem:[%s1 + $0xc] sm:$0x1]
    %v60 = vld [vmem:[%s1 + $0xd] sm:$0x1]
    %v61 = vld [vmem:[%s1 + $0xe] sm:$0x1]
    %v62 = vld [vmem:[%s1 + $0xf] sm:$0x1]
    %v63 = vld [vmem:[%s1 + $0x10] sm:$0x1]
    %v64 = vld [vmem:[%s1 + $0x11] sm:$0x1]
    %v65 = vld [vmem:[%s1 + $0x12] sm:$0x1]
    %v66 = vld [vmem:[%s1 + $0x13] sm:$0x1]
    %v67 = vld [vmem:[%s1 + $0x14] sm:$0x1]
    %v68 = vld [vmem:[%s1 + $0x15] sm:$0x1]
    %v69 = vld [vmem:[%s1 + $0x16] sm:$0x1]
    %v70 = vld [vmem:[%s1 + $0x17] sm:$0x1]
    %v71 = vld [vmem:[%s1 + $0x18] sm:$0x1]
    %v72 = vld [vmem:[%s1 + $0x19] sm:$0x1]
    %v73 = vld [vmem:[%s1 + $0x1a] sm:$0x1]
    %v74 = vld [vmem:[%s1 + $0x1b] sm:$0x1]
    %v75 = vld [vmem:[%s1 + $0x1c] sm:$0x1]
    %v76 = vld [vmem:[%s1 + $0x1d] sm:$0x1]
    %v77 = vld [vmem:[%s1 + $0x1e] sm:$0x1]
    %v78 = vld [vmem:[%s1 + $0x1f] sm:$0x1]
    %v79 = vld [vmem:[%s2] sm:$0x1]
    %v80 = vld [vmem:[%s2 + $0x1] sm:$0x1]
    %v81 = vld [vmem:[%s2 + $0x2] sm:$0x1]
    %v82 = vld [vmem:[%s2 + $0x3] sm:$0x1]
    %v83 = vld [vmem:[%s2 + $0x4] sm:$0x1]
    %v84 = vld [vmem:[%s2 + $0x5] sm:$0x1]
    %v85 = vld [vmem:[%s2 + $0x6] sm:$0x1]
    %v86 = vld [vmem:[%s2 + $0x7] sm:$0x1]
    %v87 = vld [vmem:[%s2 + $0x8] sm:$0x1]
    %v88 = vld [vmem:[%s2 + $0x9] sm:$0x1]
    %v89 = vld [vmem:[%s2 + $0xa] sm:$0x1]
    %v90 = vld [vmem:[%s2 + $0xb] sm:$0x1]
    %v91 = vld [vmem:[%s2 + $0xc] sm:$0x1]
    %v92 = vld [vmem:[%s2 + $0xd] sm:$0x1]
    %v93 = vld [vmem:[%s2 + $0xe] sm:$0x1]
    %v94 = vld [vmem:[%s2 + $0xf] sm:$0x1]
    %v95 = vld [vmem:[%s2 + $0x10] sm:$0x1]
    %v96 = vld [vmem:[%s2 + $0x11] sm:$0x1]
    %v97 = vld [vmem:[%s2 + $0x12] sm:$0x1]
    %v98 = vld [vmem:[%s2 + $0x13] sm:$0x1]
    %v99 = vld [vmem:[%s2 + $0x14] sm:$0x1]
    %v100 = vld [vmem:[%s2 + $0x15] sm:$0x1]
    %v101 = vld [vmem:[%s2 + $0x16] sm:$0x1]
    %v102 = vld [vmem:[%s2 + $0x17] sm:$0x1]
    %v103 = vld [vmem:[%s2 + $0x18] sm:$0x1]
    %v104 = vld [vmem:[%s2 + $0x19] sm:$0x1]
    %v105 = vld [vmem:[%s2 + $0x1a] sm:$0x1]
    %v106 = vld [vmem:[%s2 + $0x1b] sm:$0x1]
    %v107 = vld [vmem:[%s2 + $0x1c] sm:$0x1]
    %v108 = vld [vmem:[%s2 + $0x1d] sm:$0x1]
    %v109 = vld [vmem:[%s2 + $0x1e] sm:$0x1]
    %v110 = vld [vmem:[%s2 + $0x1f] sm:$0x1]
    %v143 = vperm.slane %v47, 0
    %v144 = vperm.slane %v48, 0
    %v145 = vperm.slane %v49, 0
    %v146 = vperm.slane %v50, 0
    %v147 = vperm.slane %v51, 0
    %v148 = vperm.slane %v52, 0
    %v149 = vperm.slane %v53, 0
    %v150 = vperm.slane %v54, 0
    %v151 = vperm.slane %v55, 0
    %v152 = vperm.slane %v56, 0
    %v153 = vperm.slane %v57, 0
    %v154 = vperm.slane %v58, 0
    %v155 = vperm.slane %v59, 0
    %v156 = vperm.slane %v60, 0
    %v157 = vperm.slane %v61, 0
    %v158 = vperm.slane %v62, 0
    %v159 = vperm.slane %v63, 0
    %v160 = vperm.slane %v64, 0
    %v161 = vperm.slane %v65, 0
    %v162 = vperm.slane %v66, 0
    %v163 = vperm.slane %v67, 0
    %v164 = vperm.slane %v68, 0
    %v165 = vperm.slane %v69, 0
    %v166 = vperm.slane %v70, 0
    %v167 = vperm.slane %v71, 0
    %v168 = vperm.slane %v72, 0
    %v169 = vperm.slane %v73, 0
    %v170 = vperm.slane %v74, 0
    %v171 = vperm.slane %v75, 0
    %v172 = vperm.slane %v76, 0
    %v173 = vperm.slane %v77, 0
    %v174 = vperm.slane %v78, 0
    %v207 = vsub.f32 %v143, %v15
    %v208 = vsub.f32 %v144, %v16
    %v209 = vsub.f32 %v145, %v17
    %v210 = vsub.f32 %v146, %v18
    %v211 = vsub.f32 %v147, %v19
    %v212 = vsub.f32 %v148, %v20
    %v213 = vsub.f32 %v149, %v21
    %v214 = vsub.f32 %v150, %v22
    %v215 = vsub.f32 %v151, %v23
    %v216 = vsub.f32 %v152, %v24
    %v217 = vsub.f32 %v153, %v25
    %v218 = vsub.f32 %v154, %v26
    %v219 = vsub.f32 %v155, %v27
    %v220 = vsub.f32 %v156, %v28
    %v221 = vsub.f32 %v157, %v29
    %v222 = vsub.f32 %v158, %v30
    %v223 = vsub.f32 %v159, %v31
    %v224 = vsub.f32 %v160, %v32
    %v225 = vsub.f32 %v161, %v33
    %v226 = vsub.f32 %v162, %v34
    %v227 = vsub.f32 %v163, %v35
    %v228 = vsub.f32 %v164, %v36
    %v229 = vsub.f32 %v165, %v37
    %v230 = vsub.f32 %v166, %v38
    %v231 = vsub.f32 %v167, %v39
    %v232 = vsub.f32 %v168, %v40
    %v233 = vsub.f32 %v169, %v41
    %v234 = vsub.f32 %v170, %v42
    %v235 = vsub.f32 %v171, %v43
    %v236 = vsub.f32 %v172, %v44
    %v237 = vsub.f32 %v173, %v45
    %v238 = vsub.f32 %v174, %v46
    %v271 = vperm.slane %v79, 0
    %v272 = vperm.slane %v80, 0
    %v273 = vperm.slane %v81, 0
    %v274 = vperm.slane %v82, 0
    %v275 = vperm.slane %v83, 0
    %v276 = vperm.slane %v84, 0
    %v277 = vperm.slane %v85, 0
    %v278 = vperm.slane %v86, 0
    %v279 = vperm.slane %v87, 0
    %v280 = vperm.slane %v88, 0
    %v281 = vperm.slane %v89, 0
    %v282 = vperm.slane %v90, 0
    %v283 = vperm.slane %v91, 0
    %v284 = vperm.slane %v92, 0
    %v285 = vperm.slane %v93, 0
    %v286 = vperm.slane %v94, 0
    %v287 = vperm.slane %v95, 0
    %v288 = vperm.slane %v96, 0
    %v289 = vperm.slane %v97, 0
    %v290 = vperm.slane %v98, 0
    %v291 = vperm.slane %v99, 0
    %v292 = vperm.slane %v100, 0
    %v293 = vperm.slane %v101, 0
    %v294 = vperm.slane %v102, 0
    %v295 = vperm.slane %v103, 0
    %v296 = vperm.slane %v104, 0
    %v297 = vperm.slane %v105, 0
    %v298 = vperm.slane %v106, 0
    %v299 = vperm.slane %v107, 0
    %v300 = vperm.slane %v108, 0
    %v301 = vperm.slane %v109, 0
    %v302 = vperm.slane %v110, 0
    %v335 = vmul.f32 %v271, %v207
    %v336 = vmul.f32 %v272, %v208
    %v337 = vmul.f32 %v273, %v209
    %v338 = vmul.f32 %v274, %v210
    %v339 = vmul.f32 %v275, %v211
    %v340 = vmul.f32 %v276, %v212
    %v341 = vmul.f32 %v277, %v213
    %v342 = vmul.f32 %v278, %v214
    %v343 = vmul.f32 %v279, %v215
    %v344 = vmul.f32 %v280, %v216
    %v345 = vmul.f32 %v281, %v217
    %v346 = vmul.f32 %v282, %v218
    %v347 = vmul.f32 %v283, %v219
    %v348 = vmul.f32 %v284, %v220
    %v349 = vmul.f32 %v285, %v221
    %v350 = vmul.f32 %v286, %v222
    %v351 = vmul.f32 %v287, %v223
    %v352 = vmul.f32 %v288, %v224
    %v353 = vmul.f32 %v289, %v225
    %v354 = vmul.f32 %v290, %v226
    %v355 = vmul.f32 %v291, %v227
    %v356 = vmul.f32 %v292, %v228
    %v357 = vmul.f32 %v293, %v229
    %v358 = vmul.f32 %v294, %v230
    %v359 = vmul.f32 %v295, %v231
    %v360 = vmul.f32 %v296, %v232
    %v361 = vmul.f32 %v297, %v233
    %v362 = vmul.f32 %v298, %v234
    %v363 = vmul.f32 %v299, %v235
    %v364 = vmul.f32 %v300, %v236
    %v365 = vmul.f32 %v301, %v237
    %v366 = vmul.f32 %v302, %v238
    %v367 = vadd.f32 %v15, %v335
    %v368 = vadd.f32 %v16, %v336
    %v369 = vadd.f32 %v17, %v337
    %v370 = vadd.f32 %v18, %v338
    %v371 = vadd.f32 %v19, %v339
    %v372 = vadd.f32 %v20, %v340
    %v373 = vadd.f32 %v21, %v341
    %v374 = vadd.f32 %v22, %v342
    %v375 = vadd.f32 %v23, %v343
    %v376 = vadd.f32 %v24, %v344
    %v377 = vadd.f32 %v25, %v345
    %v378 = vadd.f32 %v26, %v346
    %v379 = vadd.f32 %v27, %v347
    %v380 = vadd.f32 %v28, %v348
    %v381 = vadd.f32 %v29, %v349
    %v382 = vadd.f32 %v30, %v350
    %v383 = vadd.f32 %v31, %v351
    %v384 = vadd.f32 %v32, %v352
    %v385 = vadd.f32 %v33, %v353
    %v386 = vadd.f32 %v34, %v354
    %v387 = vadd.f32 %v35, %v355
    %v388 = vadd.f32 %v36, %v356
    %v389 = vadd.f32 %v37, %v357
    %v390 = vadd.f32 %v38, %v358
    %v391 = vadd.f32 %v39, %v359
    %v392 = vadd.f32 %v40, %v360
    %v393 = vadd.f32 %v41, %v361
    %v394 = vadd.f32 %v42, %v362
    %v395 = vadd.f32 %v43, %v363
    %v396 = vadd.f32 %v44, %v364
    %v397 = vadd.f32 %v45, %v365
    %v398 = vadd.f32 %v46, %v366
    %v399 = vmax.f32 %v367, 0.0
    %v400 = vmax.f32 %v368, 0.0
    %v401 = vmax.f32 %v369, 0.0
    %v402 = vmax.f32 %v370, 0.0
    %v403 = vmax.f32 %v371, 0.0
    %v404 = vmax.f32 %v372, 0.0
    %v405 = vmax.f32 %v373, 0.0
    %v406 = vmax.f32 %v374, 0.0
    %v407 = vmax.f32 %v375, 0.0
    %v408 = vmax.f32 %v376, 0.0
    %v409 = vmax.f32 %v377, 0.0
    %v410 = vmax.f32 %v378, 0.0
    %v411 = vmax.f32 %v379, 0.0
    %v412 = vmax.f32 %v380, 0.0
    %v413 = vmax.f32 %v381, 0.0
    %v414 = vmax.f32 %v382, 0.0
    %v415 = vmax.f32 %v383, 0.0
    %v416 = vmax.f32 %v384, 0.0
    %v417 = vmax.f32 %v385, 0.0
    %v418 = vmax.f32 %v386, 0.0
    %v419 = vmax.f32 %v387, 0.0
    %v420 = vmax.f32 %v388, 0.0
    %v421 = vmax.f32 %v389, 0.0
    %v422 = vmax.f32 %v390, 0.0
    %v423 = vmax.f32 %v391, 0.0
    %v424 = vmax.f32 %v392, 0.0
    %v425 = vmax.f32 %v393, 0.0
    %v426 = vmax.f32 %v394, 0.0
    %v427 = vmax.f32 %v395, 0.0
    %v428 = vmax.f32 %v396, 0.0
    %v429 = vmax.f32 %v397, 0.0
    %v430 = vmax.f32 %v398, 0.0
    %v431 = vmin.f32 %v399, 1.0
    %v432 = vmin.f32 %v400, 1.0
    %v433 = vmin.f32 %v401, 1.0
    %v434 = vmin.f32 %v402, 1.0
    %v435 = vmin.f32 %v403, 1.0
    %v436 = vmin.f32 %v404, 1.0
    %v437 = vmin.f32 %v405, 1.0
    %v438 = vmin.f32 %v406, 1.0
    %v439 = vmin.f32 %v407, 1.0
    %v440 = vmin.f32 %v408, 1.0
    %v441 = vmin.f32 %v409, 1.0
    %v442 = vmin.f32 %v410, 1.0
    %v443 = vmin.f32 %v411, 1.0
    %v444 = vmin.f32 %v412, 1.0
    %v445 = vmin.f32 %v413, 1.0
    %v446 = vmin.f32 %v414, 1.0
    %v447 = vmin.f32 %v415, 1.0
    %v448 = vmin.f32 %v416, 1.0
    %v449 = vmin.f32 %v417, 1.0
    %v450 = vmin.f32 %v418, 1.0
    %v451 = vmin.f32 %v419, 1.0
    %v452 = vmin.f32 %v420, 1.0
    %v453 = vmin.f32 %v421, 1.0
    %v454 = vmin.f32 %v422, 1.0
    %v455 = vmin.f32 %v423, 1.0
    %v456 = vmin.f32 %v424, 1.0
    %v457 = vmin.f32 %v425, 1.0
    %v458 = vmin.f32 %v426, 1.0
    %v459 = vmin.f32 %v427, 1.0
    %v460 = vmin.f32 %v428, 1.0
    %v461 = vmin.f32 %v429, 1.0
    %v462 = vmin.f32 %v430, 1.0
    %vm463 = vcmask 125952
    %464 = vst.msk [vmem:[#allocation2] sm:$0xf] %vm463, %v431
    %465 = vst.msk [vmem:[#allocation2 + $0x4] sm:$0xf] %vm463, %v432
    %466 = vst.msk [vmem:[#allocation2 + $0x8] sm:$0xf] %vm463, %v433
    %467 = vst.msk [vmem:[#allocation2 + $0xc] sm:$0xf] %vm463, %v434
    %468 = vst.msk [vmem:[#allocation2 + $0x10] sm:$0xf] %vm463, %v435
    %469 = vst.msk [vmem:[#allocation2 + $0x14] sm:$0xf] %vm463, %v436
    %470 = vst.msk [vmem:[#allocation2 + $0x18] sm:$0xf] %vm463, %v437
    %471 = vst.msk [vmem:[#allocation2 + $0x1c] sm:$0xf] %vm463, %v438
    %472 = vst.msk [vmem:[#allocation2 + $0x20] sm:$0xf] %vm463, %v439
    %473 = vst.msk [vmem:[#allocation2 + $0x24] sm:$0xf] %vm463, %v440
    %474 = vst.msk [vmem:[#allocation2 + $0x28] sm:$0xf] %vm463, %v441
    %475 = vst.msk [vmem:[#allocation2 + $0x2c] sm:$0xf] %vm463, %v442
    %476 = vst.msk [vmem:[#allocation2 + $0x30] sm:$0xf] %vm463, %v443
    %477 = vst.msk [vmem:[#allocation2 + $0x34] sm:$0xf] %vm463, %v444
    %478 = vst.msk [vmem:[#allocation2 + $0x38] sm:$0xf] %vm463, %v445
    %479 = vst.msk [vmem:[#allocation2 + $0x3c] sm:$0xf] %vm463, %v446
    %480 = vst.msk [vmem:[#allocation2 + $0x40] sm:$0xf] %vm463, %v447
    %481 = vst.msk [vmem:[#allocation2 + $0x44] sm:$0xf] %vm463, %v448
    %482 = vst.msk [vmem:[#allocation2 + $0x48] sm:$0xf] %vm463, %v449
    %483 = vst.msk [vmem:[#allocation2 + $0x4c] sm:$0xf] %vm463, %v450
    %484 = vst.msk [vmem:[#allocation2 + $0x50] sm:$0xf] %vm463, %v451
    %485 = vst.msk [vmem:[#allocation2 + $0x54] sm:$0xf] %vm463, %v452
    %486 = vst.msk [vmem:[#allocation2 + $0x58] sm:$0xf] %vm463, %v453
    %487 = vst.msk [vmem:[#allocation2 + $0x5c] sm:$0xf] %vm463, %v454
    %488 = vst.msk [vmem:[#allocation2 + $0x60] sm:$0xf] %vm463, %v455
    %489 = vst.msk [vmem:[#allocation2 + $0x64] sm:$0xf] %vm463, %v456
    %490 = vst.msk [vmem:[#allocation2 + $0x68] sm:$0xf] %vm463, %v457
    %491 = vst.msk [vmem:[#allocation2 + $0x6c] sm:$0xf] %vm463, %v458
    %492 = vst.msk [vmem:[#allocation2 + $0x70] sm:$0xf] %vm463, %v459
    %493 = vst.msk [vmem:[#allocation2 + $0x74] sm:$0xf] %vm463, %v460
    %494 = vst.msk [vmem:[#allocation2 + $0x78] sm:$0xf] %vm463, %v461
    %495 = vst.msk [vmem:[#allocation2 + $0x7c] sm:$0xf] %vm463, %v462
    // Predicated region
    $region14: #{attack.1} parent=1 // pred_check
      _
    $region15: #{attack.1} parent=1 // pred_check_branch
      %497 = sbr.rel (0) target = $region17
    $region16: #{attack.1} parent=1 // pred_region
      %499 = vsyncadd [#allocation3], 0
      %s500 = sshll.u32 [#allocation2], 4
      %s501 = int_to_ptr.vmem [resolvable:$true] %s500
      %s502 = sshll.u32 %s3, 4
      %s503 = int_to_ptr.hbm [resolvable:$true] %s502
      %508 = dma.vmem_to_hbm [thread:$0]  %s501, 2048, %s503, [#allocation3], 64, 64, 4
    $region17: #{attack.1} parent=1 // pred_fallthru
      _
    // Predicated region
    $region18: #{attack.1} parent=1 // pred_check
      _
    $region19: #{attack.1} parent=1 // pred_check_branch
      %510 = sbr.rel (0) target = $region21
    $region20: #{attack.1} parent=1 // pred_region
      %512 = dma.done [#allocation3], 2048
    $region21: #{attack.1} parent=1 // pred_fallthru
      _
    %513 = vsyncpa [#allocation3], 1

</llo_original>
